<compile_context>
chip_gen: v6e
topology: v6e:2x2x1
jax: 0.10.0
libtpu: 0.0.40
codegen_flags: <defaults>
</compile_context>

<pallas_src>
import math
import jax
import jax.numpy as jnp
from jax.experimental import pallas as pl
from jax.experimental.pallas import tpu as pltpu


# ------------------------------ small helpers -------------------------------

def _gelu_exact(x):
    # nn.GELU() default ('none') = exact erf formulation.
    return 0.5 * x * (1.0 + jax.lax.erf(x * (1.0 / math.sqrt(2.0))))


def timestep_embedding_ref(timesteps, dim, max_period=1000):
    """Matches the PyTorch reference (cos first, then sin). Used by the ref path."""
    half = dim // 2
    freqs = jnp.exp(
        -math.log(max_period) * jnp.arange(0, half, dtype=jnp.float32) / half
    )
    args = timesteps[:, None].astype(jnp.float32) * freqs[None]
    emb = jnp.concatenate([jnp.cos(args), jnp.sin(args)], axis=-1)
    if dim % 2:
        emb = jnp.concatenate([emb, jnp.zeros_like(emb[:, :1])], axis=-1)
    return emb


# ------------------------------- Pallas kernel ------------------------------

def plas_kernel(nf_ref, np_ref, t_ref, freqs_ref, phase_ref,
                w_nf_ref, w_np_ref, w_trig_ref, b_fold_ref,
                w2_ref, b2_ref, out_ref):
    # Fused timestep embedding via a single trig stream (phase trick):
    #   rows [0, half)       -> cos(t * f)
    #   rows [half, 2*half)  -> cos(t * f - pi/2) = sin(t * f)
    args = freqs_ref[...] * t_ref[...] + phase_ref[...]        # (2*half, tile)
    trig = jnp.cos(args)

    # Folded affine map enc -> main(stand-in) -> pred_head[0], feature-major:
    # h = W_fold^T @ [nf; pos; cos; sin] + b_fold^T, assembled implicitly by
    # splitting the folded weight into column blocks (no concat).
    h = jnp.dot(w_trig_ref[...], trig,
                preferred_element_type=jnp.float32)             # (D, tile)
    h = h + jnp.dot(w_np_ref[...], np_ref[...],
                    preferred_element_type=jnp.float32)
    h = h + jnp.dot(w_nf_ref[...], nf_ref[...],
                    preferred_element_type=jnp.float32)
    h = h + b_fold_ref[...]

    # pred_head[1]: GELU (exact erf, matches nn.GELU default)
    h = _gelu_exact(h)

    # pred_head[2]: Linear(out_dim -> 4); lane-dense (4, tile) store.
    out_ref[...] = (jnp.dot(w2_ref[...], h, preferred_element_type=jnp.float32)
                    + b2_ref[...]).astype(out_ref.dtype)


# --------------------------------- wrapper ----------------------------------

def plas_forward(node_features, node_positions, time, params,
                 *, max_period=1000, tile_n=8192):
    """node_features: (N, F=1), node_positions: (N, d), time: (N,) -> (N, 4)."""
    w_enc, b_enc, w_main, b_main, w1, b1, w2, b2 = params

    N, feat = node_features.shape
    dim_pos = node_positions.shape[1]
    in_dim = w_enc.shape[1]
    out_dim = w1.shape[1]
    half = in_dim // 2

    # --- fold enc -> main (linear stand-in) -> pred_head[0] into one affine map
    # TODO(synk): only valid while main_model is the linear stand-in.
    w_chain = w_enc @ w_main @ w1                    # (Din, out_dim)
    b_fold = (b_enc @ w_main + b_main) @ w1 + b1     # (1, out_dim)

    # Split folded weight per input block and transpose to feature-major.
    # (If in_dim is odd, the trailing zero-padded embedding column's weight row
    #  is dropped — it always multiplies zero.)
    o = 0
    w_nfT = w_chain[o:o + feat].T; o += feat                    # (D, feat)
    w_npT = w_chain[o:o + dim_pos].T; o += dim_pos              # (D, d)
    w_trigT = w_chain[o:o + 2 * half].T; o += 2 * half          # (D, 2*half)
    b_foldT = b_fold.reshape(out_dim, 1)                        # (D, 1)
    w2T = w2.T                                                  # (4, D)
    b2T = b2.reshape(-1, 1)                                     # (4, 1)

    freqs = jnp.exp(
        -math.log(max_period) * jnp.arange(0, half, dtype=jnp.float32) / half
    )
    freqs2 = jnp.concatenate([freqs, freqs]).reshape(2 * half, 1)
    phase = jnp.concatenate(
        [jnp.zeros((half,), jnp.float32),
         jnp.full((half,), -0.5 * math.pi, jnp.float32)]).reshape(2 * half, 1)

    # Node-side streams, feature-major (nodes on lanes). No pad, no concat.
    nfT = node_features.T.astype(jnp.float32)        # (feat, N)
    npT = node_positions.T.astype(jnp.float32)       # (d, N)
    tT = time.reshape(1, N).astype(jnp.float32)      # (1, N)   (free reshape)

    # Tile selection: lane tile is a multiple of 128 (or == N when N < 128);
    # partial last block is masked by Pallas.
    if N < 128:
        tile = N
    else:
        tile = max(128, min(tile_n, (N // 128) * 128))
    grid = pl.cdiv(N, tile)

    const = lambda arr: pl.BlockSpec(arr.shape, lambda i: (0, 0))
    row = lambda r: pl.BlockSpec((r, tile), lambda i: (0, i))

    out = pl.pallas_call(
        plas_kernel,
        out_shape=jax.ShapeDtypeStruct((4, N), jnp.float32),
        grid_spec=pltpu.PrefetchScalarGridSpec(
            num_scalar_prefetch=0,
            grid=(grid,),
            in_specs=[
                row(feat),          # node_features^T tile
                row(dim_pos),       # node_positions^T tile
                row(1),             # time tile
                const(freqs2),      # stacked freqs
                const(phase),       # phase offsets (0 / -pi/2)
                const(w_nfT),       # W_fold^T[:, feat cols]
                const(w_npT),       # W_fold^T[:, pos cols]
                const(w_trigT),     # W_fold^T[:, cos|sin cols]
                const(b_foldT),     # b_fold^T
                const(w2T),         # W2^T
                const(b2T),         # b2^T
            ],
            out_specs=pl.BlockSpec((4, tile), lambda i: (0, i)),
        ),
        compiler_params=pltpu.CompilerParams(
            dimension_semantics=("parallel",)),
    )(nfT, npT, tT, freqs2, phase, w_nfT, w_npT, w_trigT, b_foldT, w2T, b2T)

    return out.T   # back to (N, 4) to match the module's output layout


# ------------------------------ reference (JAX) ------------------------------

def plas_forward_ref(node_features, node_positions, time, params):
    w_enc, b_enc, w_main, b_main, w1, b1, w2, b2 = params
    in_dim = w_enc.shape[1]
    temb = timestep_embedding_ref(time, in_dim)
    x = jnp.concatenate([node_features, node_positions, temb], axis=-1)
    h = x @ w_enc + b_enc
    h = h @ w_main + b_main            # main_model stand-in (TODO above)
    h = h @ w1 + b1
    h = _gelu_exact(h)
    return h @ w2 + b2


# ----------------------------------- main ------------------------------------

if __name__ == "__main__":
    # Small, deterministic problem sizes (N intentionally not a multiple of the
    # lane tile to exercise the masked partial-block path).
    N = 200               # number of nodes
    dimensionality = 3    # spatial dims of node positions
    in_dim = 32           # main_model.in_dim
    out_dim = 32          # main_model.out_dim
    d_in = dimensionality + 1 + in_dim  # enc input dim (node_features width 1)

    key = jax.random.PRNGKey(0)
    keys = jax.random.split(key, 11)

    node_features = jax.random.normal(keys[0], (N, 1), dtype=jnp.float32)
    node_positions = jax.random.normal(keys[1], (N, dimensionality), dtype=jnp.float32)
    time = jax.random.uniform(keys[2], (N,), dtype=jnp.float32, maxval=1000.0)

    def linear_init(kw, kb, fan_in, fan_out):
        bound = 1.0 / math.sqrt(fan_in)
        w = jax.random.uniform(kw, (fan_in, fan_out), minval=-bound, maxval=bound,
                               dtype=jnp.float32)
        b = jax.random.uniform(kb, (1, fan_out), minval=-bound, maxval=bound,
                               dtype=jnp.float32)
        return w, b

    w_enc, b_enc = linear_init(keys[3], keys[4], d_in, in_dim)
    w_main, b_main = linear_init(keys[5], keys[6], in_dim, out_dim)
    w1, b1 = linear_init(keys[7], keys[8], out_dim, out_dim)
    w2, b2 = linear_init(keys[9], keys[10], out_dim, 4)
    params = (w_enc, b_enc, w_main, b_main, w1, b1, w2, b2)

    out = plas_forward(node_features, node_positions, time, params)
    out = jax.block_until_ready(out)

    ref = plas_forward_ref(node_features, node_positions, time, params)
    assert out.shape == (N, 4)
    max_diff = float(jnp.max(jnp.abs(out - ref)))
    assert jnp.allclose(out, ref, atol=1e-3, rtol=1e-3), (
        f"mismatch vs reference (max abs diff {max_diff})")

    print("KERNEL_OK")
</pallas_src>

<mosaic_0001>
module attributes {stable_mosaic.version = 11 : i64} {
  func.func @plas_kernel(%arg0: i32, %arg1: memref<1x128xf32, #tpu.memory_space<vmem>>, %arg2: memref<3x128xf32, #tpu.memory_space<vmem>>, %arg3: memref<1x128xf32, #tpu.memory_space<vmem>>, %arg4: memref<32x1xf32, #tpu.memory_space<vmem>>, %arg5: memref<32x1xf32, #tpu.memory_space<vmem>>, %arg6: memref<32x1xf32, #tpu.memory_space<vmem>>, %arg7: memref<32x3xf32, #tpu.memory_space<vmem>>, %arg8: memref<32x32xf32, #tpu.memory_space<vmem>>, %arg9: memref<32x1xf32, #tpu.memory_space<vmem>>, %arg10: memref<4x32xf32, #tpu.memory_space<vmem>>, %arg11: memref<4x1xf32, #tpu.memory_space<vmem>>, %arg12: memref<4x128xf32, #tpu.memory_space<vmem>>) attributes {dimension_semantics = [#tpu.dimension_semantics<parallel>], iteration_bounds = array<i64: 2>, scalar_prefetch = 0 : i64, scratch_operands = 0 : i64, tpu.core_type = #tpu.core_type<tc>, window_params = [{transform_indices = @transform_0, window_bounds = array<i64: 1, 128>}, {transform_indices = @transform_1, window_bounds = array<i64: 3, 128>}, {transform_indices = @transform_2, window_bounds = array<i64: 1, 128>}, {pipeline_mode = #tpu.pipeline_mode<synchronous>, transform_indices = @transform_3, window_bounds = array<i64: 32, 1>}, {pipeline_mode = #tpu.pipeline_mode<synchronous>, transform_indices = @transform_4, window_bounds = array<i64: 32, 1>}, {pipeline_mode = #tpu.pipeline_mode<synchronous>, transform_indices = @transform_5, window_bounds = array<i64: 32, 1>}, {pipeline_mode = #tpu.pipeline_mode<synchronous>, transform_indices = @transform_6, window_bounds = array<i64: 32, 3>}, {pipeline_mode = #tpu.pipeline_mode<synchronous>, transform_indices = @transform_7, window_bounds = array<i64: 32, 32>}, {pipeline_mode = #tpu.pipeline_mode<synchronous>, transform_indices = @transform_8, window_bounds = array<i64: 32, 1>}, {pipeline_mode = #tpu.pipeline_mode<synchronous>, transform_indices = @transform_9, window_bounds = array<i64: 4, 32>}, {pipeline_mode = #tpu.pipeline_mode<synchronous>, transform_indices = @transform_10, window_bounds = array<i64: 4, 1>}, {transform_indices = @transform_11, window_bounds = array<i64: 4, 128>}]} {
    %c0 = arith.constant 0 : index
    %c0_0 = arith.constant 0 : index
    %0 = vector.load %arg4[%c0, %c0_0] : memref<32x1xf32, #tpu.memory_space<vmem>>, vector<32x1xf32>
    %c0_1 = arith.constant 0 : index
    %c0_2 = arith.constant 0 : index
    %1 = vector.load %arg3[%c0_1, %c0_2] : memref<1x128xf32, #tpu.memory_space<vmem>>, vector<1x128xf32>
    %2 = vector.broadcast %0 : vector<32x1xf32> to vector<32x128xf32>
    %3 = vector.broadcast %1 : vector<1x128xf32> to vector<32x128xf32>
    %4 = arith.mulf %2, %3 : vector<32x128xf32>
    %c0_3 = arith.constant 0 : index
    %c0_4 = arith.constant 0 : index
    %5 = vector.load %arg5[%c0_3, %c0_4] : memref<32x1xf32, #tpu.memory_space<vmem>>, vector<32x1xf32>
    %6 = vector.broadcast %5 : vector<32x1xf32> to vector<32x128xf32>
    %7 = arith.addf %4, %6 : vector<32x128xf32>
    %8 = math.cos %7 : vector<32x128xf32>
    %c0_5 = arith.constant 0 : index
    %c0_6 = arith.constant 0 : index
    %9 = vector.load %arg8[%c0_5, %c0_6] : memref<32x32xf32, #tpu.memory_space<vmem>>, vector<32x32xf32>
    %cst = arith.constant dense<0.000000e+00> : vector<32x128xf32>
    %10 = tpu.matmul %9, %8, %cst {dimension_numbers = #tpu.dot_dimension_numbers<[1], [0], [0], [1], [0, 0, 1, 1], [], []>} : vector<32x32xf32>, vector<32x128xf32>, vector<32x128xf32> -> vector<32x128xf32>
    %c0_7 = arith.constant 0 : index
    %c0_8 = arith.constant 0 : index
    %11 = vector.load %arg7[%c0_7, %c0_8] : memref<32x3xf32, #tpu.memory_space<vmem>>, vector<32x3xf32>
    %c0_9 = arith.constant 0 : index
    %c0_10 = arith.constant 0 : index
    %12 = vector.load %arg2[%c0_9, %c0_10] : memref<3x128xf32, #tpu.memory_space<vmem>>, vector<3x128xf32>
    %cst_11 = arith.constant dense<0.000000e+00> : vector<32x128xf32>
    %13 = tpu.matmul %11, %12, %cst_11 {dimension_numbers = #tpu.dot_dimension_numbers<[1], [0], [0], [1], [0, 0, 1, 1], [], []>} : vector<32x3xf32>, vector<3x128xf32>, vector<32x128xf32> -> vector<32x128xf32>
    %14 = arith.addf %10, %13 : vector<32x128xf32>
    %c0_12 = arith.constant 0 : index
    %c0_13 = arith.constant 0 : index
    %15 = vector.load %arg6[%c0_12, %c0_13] : memref<32x1xf32, #tpu.memory_space<vmem>>, vector<32x1xf32>
    %c0_14 = arith.constant 0 : index
    %c0_15 = arith.constant 0 : index
    %16 = vector.load %arg1[%c0_14, %c0_15] : memref<1x128xf32, #tpu.memory_space<vmem>>, vector<1x128xf32>
    %cst_16 = arith.constant dense<0.000000e+00> : vector<32x128xf32>
    %17 = tpu.matmul %15, %16, %cst_16 {dimension_numbers = #tpu.dot_dimension_numbers<[1], [0], [0], [1], [0, 0, 1, 1], [], []>} : vector<32x1xf32>, vector<1x128xf32>, vector<32x128xf32> -> vector<32x128xf32>
    %18 = arith.addf %14, %17 : vector<32x128xf32>
    %c0_17 = arith.constant 0 : index
    %c0_18 = arith.constant 0 : index
    %19 = vector.load %arg9[%c0_17, %c0_18] : memref<32x1xf32, #tpu.memory_space<vmem>>, vector<32x1xf32>
    %20 = vector.broadcast %19 : vector<32x1xf32> to vector<32x128xf32>
    %21 = arith.addf %18, %20 : vector<32x128xf32>
    %cst_19 = arith.constant 5.000000e-01 : f32
    %22 = vector.broadcast %cst_19 : f32 to vector<32x128xf32>
    %23 = arith.mulf %22, %21 : vector<32x128xf32>
    %cst_20 = arith.constant 0.707106769 : f32
    %24 = vector.broadcast %cst_20 : f32 to vector<32x128xf32>
    %25 = arith.mulf %21, %24 : vector<32x128xf32>
    %26 = math.erf %25 : vector<32x128xf32>
    %cst_21 = arith.constant 1.000000e+00 : f32
    %27 = vector.broadcast %cst_21 : f32 to vector<32x128xf32>
    %28 = arith.addf %27, %26 : vector<32x128xf32>
    %29 = arith.mulf %23, %28 : vector<32x128xf32>
    %c0_22 = arith.constant 0 : index
    %c0_23 = arith.constant 0 : index
    %30 = vector.load %arg10[%c0_22, %c0_23] : memref<4x32xf32, #tpu.memory_space<vmem>>, vector<4x32xf32>
    %cst_24 = arith.constant dense<0.000000e+00> : vector<4x128xf32>
    %31 = tpu.matmul %30, %29, %cst_24 {dimension_numbers = #tpu.dot_dimension_numbers<[1], [0], [0], [1], [0, 0, 1, 1], [], []>} : vector<4x32xf32>, vector<32x128xf32>, vector<4x128xf32> -> vector<4x128xf32>
    %c0_25 = arith.constant 0 : index
    %c0_26 = arith.constant 0 : index
    %32 = vector.load %arg11[%c0_25, %c0_26] : memref<4x1xf32, #tpu.memory_space<vmem>>, vector<4x1xf32>
    %33 = vector.broadcast %32 : vector<4x1xf32> to vector<4x128xf32>
    %34 = arith.addf %31, %33 : vector<4x128xf32>
    %c0_27 = arith.constant 0 : index
    %c0_28 = arith.constant 0 : index
    %35 = vector.load %arg12[%c0_27, %c0_28] : memref<4x128xf32, #tpu.memory_space<vmem>>, vector<4x128xf32>
    tpu.vector_store %arg12[%c0_27, %c0_28], %34 {strides = array<i32>} : memref<4x128xf32, #tpu.memory_space<vmem>>, vector<4x128xf32>,
    return
  }
  func.func @transform_0(%arg0: i32) -> (i32, i32) {
    %c0_i32 = arith.constant 0 : i32
    %c0_i32_0 = arith.constant 0 : i32
    return %c0_i32, %arg0 : i32, i32
  }
  func.func @transform_1(%arg0: i32) -> (i32, i32) {
    %c0_i32 = arith.constant 0 : i32
    %c0_i32_0 = arith.constant 0 : i32
    return %c0_i32, %arg0 : i32, i32
  }
  func.func @transform_2(%arg0: i32) -> (i32, i32) {
    %c0_i32 = arith.constant 0 : i32
    %c0_i32_0 = arith.constant 0 : i32
    return %c0_i32, %arg0 : i32, i32
  }
  func.func @transform_3(%arg0: i32) -> (i32, i32) {
    %c0_i32 = arith.constant 0 : i32
    %c0_i32_0 = arith.constant 0 : i32
    %c0_i32_1 = arith.constant 0 : i32
    return %c0_i32, %c0_i32_0 : i32, i32
  }
  func.func @transform_4(%arg0: i32) -> (i32, i32) {
    %c0_i32 = arith.constant 0 : i32
    %c0_i32_0 = arith.constant 0 : i32
    %c0_i32_1 = arith.constant 0 : i32
    return %c0_i32, %c0_i32_0 : i32, i32
  }
  func.func @transform_5(%arg0: i32) -> (i32, i32) {
    %c0_i32 = arith.constant 0 : i32
    %c0_i32_0 = arith.constant 0 : i32
    %c0_i32_1 = arith.constant 0 : i32
    return %c0_i32, %c0_i32_0 : i32, i32
  }
  func.func @transform_6(%arg0: i32) -> (i32, i32) {
    %c0_i32 = arith.constant 0 : i32
    %c0_i32_0 = arith.constant 0 : i32
    %c0_i32_1 = arith.constant 0 : i32
    return %c0_i32, %c0_i32_0 : i32, i32
  }
  func.func @transform_7(%arg0: i32) -> (i32, i32) {
    %c0_i32 = arith.constant 0 : i32
    %c0_i32_0 = arith.constant 0 : i32
    %c0_i32_1 = arith.constant 0 : i32
    return %c0_i32, %c0_i32_0 : i32, i32
  }
  func.func @transform_8(%arg0: i32) -> (i32, i32) {
    %c0_i32 = arith.constant 0 : i32
    %c0_i32_0 = arith.constant 0 : i32
    %c0_i32_1 = arith.constant 0 : i32
    return %c0_i32, %c0_i32_0 : i32, i32
  }
  func.func @transform_9(%arg0: i32) -> (i32, i32) {
    %c0_i32 = arith.constant 0 : i32
    %c0_i32_0 = arith.constant 0 : i32
    %c0_i32_1 = arith.constant 0 : i32
    return %c0_i32, %c0_i32_0 : i32, i32
  }
  func.func @transform_10(%arg0: i32) -> (i32, i32) {
    %c0_i32 = arith.constant 0 : i32
    %c0_i32_0 = arith.constant 0 : i32
    %c0_i32_1 = arith.constant 0 : i32
    return %c0_i32, %c0_i32_0 : i32, i32
  }
  func.func @transform_11(%arg0: i32) -> (i32, i32) {
    %c0_i32 = arith.constant 0 : i32
    %c0_i32_0 = arith.constant 0 : i32
    return %c0_i32, %arg0 : i32, i32
  }
}

</mosaic_0001>

<llo_original>
// kernel: tpu_custom_call.1
$region0: #{tpu_custom_call.1}
  #allocation0 [shape = 'u32[]', space=smem, size = 0x4, offset = 0x4, fixed_abs, tag = 'smem constant byte address 0x4 - core index']
  #allocation1 [shape = 'u32[144,128]{1,0:T(1,128)}', space=vmem, size = 0x12000, scoped, tag = 'internal scratch']
  %s0 = inlined_call_operand.vmem [shape: f32[1,200], index: 0, kind: input, shape index: {}]
  %s1 = inlined_call_operand.vmem [shape: f32[3,200], index: 1, kind: input, shape index: {}]
  %s2 = inlined_call_operand.vmem [shape: f32[1,200], index: 2, kind: input, shape index: {}]
  %s3 = inlined_call_operand.vmem [shape: f32[32,1], index: 3, kind: input, shape index: {}]
  %s4 = inlined_call_operand.vmem [shape: f32[32,1], index: 4, kind: input, shape index: {}]
  %s5 = inlined_call_operand.vmem [shape: f32[32,1], index: 5, kind: input, shape index: {}]
  %s6 = inlined_call_operand.vmem [shape: f32[32,3], index: 6, kind: input, shape index: {}]
  %s7 = inlined_call_operand.vmem [shape: f32[32,32], index: 7, kind: input, shape index: {}]
  %s8 = inlined_call_operand.vmem [shape: f32[32,1], index: 8, kind: input, shape index: {}]
  %s9 = inlined_call_operand.vmem [shape: f32[4,32], index: 9, kind: input, shape index: {}]
  %s10 = inlined_call_operand.vmem [shape: f32[4,1], index: 10, kind: input, shape index: {}]
  %s11 = inlined_call_operand.hbm [shape: f32[4,200], index: 11, kind: output, shape index: {}]
  %s12 = sld [smem:[#allocation0]]
  $region77: #{tpu_custom_call.1} parent=0
    _
  %s14 = ssub.s32 1, %s12
  %s15 = scalar_select 0, %s14, %s12
  $region1: #{tpu_custom_call.1} parent=0
    #allocation2 [shape = 'u8[4096]{0}', space=vmem, size = 0x1000, scoped, tag = 'output window, operand 0']
    #allocation3 [shape = 's32[2]{0}', space=sflag, size = 0x8, scoped, tag = 'scoped memory for tpu_custom_call.1']
    %16 = vsyncpa [#allocation3], 0
    %s17 = scalar_lea.sflag [#allocation3], 1
    %18 = vsyncpa %s17, 0
    loop: start=0, step=1, limit=4
    $region2: #{tpu_custom_call.1} parent=1 // loop_pre_header
      _
    $region3: #{tpu_custom_call.1} parent=1 // loop_header
      %s20 = sphi 0, %s24
      %p21 = scmp.ge.s32.totalorder %s20, 4
      %s30 = sphi 0, %s32
      %s33 = sphi 0, %s30
      %s34 = sphi 0, %s33
      %s50 = sphi 0, %s34
      %s56 = sphi 0, %s58
      %s59 = sphi 0, %s56
      %s60 = sphi 0, %s59
      %s76 = sphi 0, %s60
      %s82 = sphi 0, %s84
      %s85 = sphi 0, %s82
      %s86 = sphi 0, %s85
      %s102 = sphi 0, %s86
      %s106 = sphi 0, %s106
      %s108 = sphi 0, %s106
      %s109 = sphi 0, %s108
      %s123 = sphi 0, %s109
      %s127 = sphi 0, %s127
      %s129 = sphi 0, %s127
      %s130 = sphi 0, %s129
      %s144 = sphi 0, %s130
      %s148 = sphi 0, %s148
      %s150 = sphi 0, %s148
      %s151 = sphi 0, %s150
      %s165 = sphi 0, %s151
      %s169 = sphi 0, %s169
      %s171 = sphi 0, %s169
      %s172 = sphi 0, %s171
      %s186 = sphi 0, %s172
      %s190 = sphi 0, %s190
      %s192 = sphi 0, %s190
      %s193 = sphi 0, %s192
      %s207 = sphi 0, %s193
      %s211 = sphi 0, %s211
      %s213 = sphi 0, %s211
      %s214 = sphi 0, %s213
      %s228 = sphi 0, %s214
      %s232 = sphi 0, %s232
      %s234 = sphi 0, %s232
      %s235 = sphi 0, %s234
      %s249 = sphi 0, %s235
      %s253 = sphi 0, %s253
      %s255 = sphi 0, %s253
      %s256 = sphi 0, %s255
      %s270 = sphi 0, %s256
      %s276 = sphi 0, %s278
      %s279 = sphi 0, %s276
      %s280 = sphi 0, %s279
      %s296 = sphi 0, %s280
    $region4: #{tpu_custom_call.1} parent=1 // loop_header_branch
      %23 = sbr.rel (%p21) target = $region8
    $region5: #{tpu_custom_call.1} parent=1 // loop_body
      %s25 = ssub.s32 %s20, 1
      %s26 = ssub.s32 %s20, 2
      %s27 = sadd.s32 %s20, 1
      %s28 = ssub.s32 %s20, %s27
      %p29 = scmp.eq.s32.totalorder %s28, 0
      %s31 = sadd.s32 %s30, 1
      %s32 = scalar_select %p29, %s30, %s31
      %p35 = pneg %p29
      %p36 = scmp.eq.s32.totalorder %s20, 1
      %p37 = por %p35, %p36
      %p38 = scmp.ne.s32.totalorder %s30, %s33
      %p39 = scmp.eq.s32.totalorder %s20, 0
      %p40 = por %p38, %p39
      %p41 = scmp.ne.s32.totalorder %s30, %s33
      %p42 = scmp.eq.s32.totalorder %s25, 1
      %p43 = por %p41, %p42
      %p44 = scmp.ne.s32.totalorder %s33, %s34
      %p45 = scmp.eq.s32.totalorder %s25, 0
      %p46 = por %p44, %p45
      %p47 = scmp.ne.s32.totalorder %s33, %s34
      %p48 = scmp.eq.s32.totalorder %s26, 1
      %p49 = por %p47, %p48
      %p51 = scmp.ne.s32.totalorder %s34, %s50
      %p52 = scmp.eq.s32.totalorder %s26, 0
      %p53 = por %p51, %p52
      %s54 = ssub.s32 %s20, %s27
      %p55 = scmp.eq.s32.totalorder %s54, 0
      %s57 = sadd.s32 %s56, 1
      %s58 = scalar_select %p55, %s56, %s57
      %p61 = pneg %p55
      %p62 = scmp.eq.s32.totalorder %s20, 1
      %p63 = por %p61, %p62
      %p64 = scmp.ne.s32.totalorder %s56, %s59
      %p65 = scmp.eq.s32.totalorder %s20, 0
      %p66 = por %p64, %p65
      %p67 = scmp.ne.s32.totalorder %s56, %s59
      %p68 = scmp.eq.s32.totalorder %s25, 1
      %p69 = por %p67, %p68
      %p70 = scmp.ne.s32.totalorder %s59, %s60
      %p71 = scmp.eq.s32.totalorder %s25, 0
      %p72 = por %p70, %p71
      %p73 = scmp.ne.s32.totalorder %s59, %s60
      %p74 = scmp.eq.s32.totalorder %s26, 1
      %p75 = por %p73, %p74
      %p77 = scmp.ne.s32.totalorder %s60, %s76
      %p78 = scmp.eq.s32.totalorder %s26, 0
      %p79 = por %p77, %p78
      %s80 = ssub.s32 %s20, %s27
      %p81 = scmp.eq.s32.totalorder %s80, 0
      %s83 = sadd.s32 %s82, 1
      %s84 = scalar_select %p81, %s82, %s83
      %p87 = pneg %p81
      %p88 = scmp.eq.s32.totalorder %s20, 1
      %p89 = por %p87, %p88
      %p90 = scmp.ne.s32.totalorder %s82, %s85
      %p91 = scmp.eq.s32.totalorder %s20, 0
      %p92 = por %p90, %p91
      %p93 = scmp.ne.s32.totalorder %s82, %s85
      %p94 = scmp.eq.s32.totalorder %s25, 1
      %p95 = por %p93, %p94
      %p96 = scmp.ne.s32.totalorder %s85, %s86
      %p97 = scmp.eq.s32.totalorder %s25, 0
      %p98 = por %p96, %p97
      %p99 = scmp.ne.s32.totalorder %s85, %s86
      %p100 = scmp.eq.s32.totalorder %s26, 1
      %p101 = por %p99, %p100
      %p103 = scmp.ne.s32.totalorder %s86, %s102
      %p104 = scmp.eq.s32.totalorder %s26, 0
      %p105 = por %p103, %p104
      %s107 = sadd.s32 %s106, 1
      %p110 = scmp.eq.s32.totalorder %s20, 1
      %p111 = scmp.ne.s32.totalorder %s106, %s108
      %p112 = scmp.eq.s32.totalorder %s20, 0
      %p113 = por %p111, %p112
      %p114 = scmp.ne.s32.totalorder %s106, %s108
      %p115 = scmp.eq.s32.totalorder %s25, 1
      %p116 = por %p114, %p115
      %p117 = scmp.ne.s32.totalorder %s108, %s109
      %p118 = scmp.eq.s32.totalorder %s25, 0
      %p119 = por %p117, %p118
      %p120 = scmp.ne.s32.totalorder %s108, %s109
      %p121 = scmp.eq.s32.totalorder %s26, 1
      %p122 = por %p120, %p121
      %p124 = scmp.ne.s32.totalorder %s109, %s123
      %p125 = scmp.eq.s32.totalorder %s26, 0
      %p126 = por %p124, %p125
      %s128 = sadd.s32 %s127, 1
      %p131 = scmp.eq.s32.totalorder %s20, 1
      %p132 = scmp.ne.s32.totalorder %s127, %s129
      %p133 = scmp.eq.s32.totalorder %s20, 0
      %p134 = por %p132, %p133
      %p135 = scmp.ne.s32.totalorder %s127, %s129
      %p136 = scmp.eq.s32.totalorder %s25, 1
      %p137 = por %p135, %p136
      %p138 = scmp.ne.s32.totalorder %s129, %s130
      %p139 = scmp.eq.s32.totalorder %s25, 0
      %p140 = por %p138, %p139
      %p141 = scmp.ne.s32.totalorder %s129, %s130
      %p142 = scmp.eq.s32.totalorder %s26, 1
      %p143 = por %p141, %p142
      %p145 = scmp.ne.s32.totalorder %s130, %s144
      %p146 = scmp.eq.s32.totalorder %s26, 0
      %p147 = por %p145, %p146
      %s149 = sadd.s32 %s148, 1
      %p152 = scmp.eq.s32.totalorder %s20, 1
      %p153 = scmp.ne.s32.totalorder %s148, %s150
      %p154 = scmp.eq.s32.totalorder %s20, 0
      %p155 = por %p153, %p154
      %p156 = scmp.ne.s32.totalorder %s148, %s150
      %p157 = scmp.eq.s32.totalorder %s25, 1
      %p158 = por %p156, %p157
      %p159 = scmp.ne.s32.totalorder %s150, %s151
      %p160 = scmp.eq.s32.totalorder %s25, 0
      %p161 = por %p159, %p160
      %p162 = scmp.ne.s32.totalorder %s150, %s151
      %p163 = scmp.eq.s32.totalorder %s26, 1
      %p164 = por %p162, %p163
      %p166 = scmp.ne.s32.totalorder %s151, %s165
      %p167 = scmp.eq.s32.totalorder %s26, 0
      %p168 = por %p166, %p167
      %s170 = sadd.s32 %s169, 1
      %p173 = scmp.eq.s32.totalorder %s20, 1
      %p174 = scmp.ne.s32.totalorder %s169, %s171
      %p175 = scmp.eq.s32.totalorder %s20, 0
      %p176 = por %p174, %p175
      %p177 = scmp.ne.s32.totalorder %s169, %s171
      %p178 = scmp.eq.s32.totalorder %s25, 1
      %p179 = por %p177, %p178
      %p180 = scmp.ne.s32.totalorder %s171, %s172
      %p181 = scmp.eq.s32.totalorder %s25, 0
      %p182 = por %p180, %p181
      %p183 = scmp.ne.s32.totalorder %s171, %s172
      %p184 = scmp.eq.s32.totalorder %s26, 1
      %p185 = por %p183, %p184
      %p187 = scmp.ne.s32.totalorder %s172, %s186
      %p188 = scmp.eq.s32.totalorder %s26, 0
      %p189 = por %p187, %p188
      %s191 = sadd.s32 %s190, 1
      %p194 = scmp.eq.s32.totalorder %s20, 1
      %p195 = scmp.ne.s32.totalorder %s190, %s192
      %p196 = scmp.eq.s32.totalorder %s20, 0
      %p197 = por %p195, %p196
      %p198 = scmp.ne.s32.totalorder %s190, %s192
      %p199 = scmp.eq.s32.totalorder %s25, 1
      %p200 = por %p198, %p199
      %p201 = scmp.ne.s32.totalorder %s192, %s193
      %p202 = scmp.eq.s32.totalorder %s25, 0
      %p203 = por %p201, %p202
      %p204 = scmp.ne.s32.totalorder %s192, %s193
      %p205 = scmp.eq.s32.totalorder %s26, 1
      %p206 = por %p204, %p205
      %p208 = scmp.ne.s32.totalorder %s193, %s207
      %p209 = scmp.eq.s32.totalorder %s26, 0
      %p210 = por %p208, %p209
      %s212 = sadd.s32 %s211, 1
      %p215 = scmp.eq.s32.totalorder %s20, 1
      %p216 = scmp.ne.s32.totalorder %s211, %s213
      %p217 = scmp.eq.s32.totalorder %s20, 0
      %p218 = por %p216, %p217
      %p219 = scmp.ne.s32.totalorder %s211, %s213
      %p220 = scmp.eq.s32.totalorder %s25, 1
      %p221 = por %p219, %p220
      %p222 = scmp.ne.s32.totalorder %s213, %s214
      %p223 = scmp.eq.s32.totalorder %s25, 0
      %p224 = por %p222, %p223
      %p225 = scmp.ne.s32.totalorder %s213, %s214
      %p226 = scmp.eq.s32.totalorder %s26, 1
      %p227 = por %p225, %p226
      %p229 = scmp.ne.s32.totalorder %s214, %s228
      %p230 = scmp.eq.s32.totalorder %s26, 0
      %p231 = por %p229, %p230
      %s233 = sadd.s32 %s232, 1
      %p236 = scmp.eq.s32.totalorder %s20, 1
      %p237 = scmp.ne.s32.totalorder %s232, %s234
      %p238 = scmp.eq.s32.totalorder %s20, 0
      %p239 = por %p237, %p238
      %p240 = scmp.ne.s32.totalorder %s232, %s234
      %p241 = scmp.eq.s32.totalorder %s25, 1
      %p242 = por %p240, %p241
      %p243 = scmp.ne.s32.totalorder %s234, %s235
      %p244 = scmp.eq.s32.totalorder %s25, 0
      %p245 = por %p243, %p244
      %p246 = scmp.ne.s32.totalorder %s234, %s235
      %p247 = scmp.eq.s32.totalorder %s26, 1
      %p248 = por %p246, %p247
      %p250 = scmp.ne.s32.totalorder %s235, %s249
      %p251 = scmp.eq.s32.totalorder %s26, 0
      %p252 = por %p250, %p251
      %s254 = sadd.s32 %s253, 1
      %p257 = scmp.eq.s32.totalorder %s20, 1
      %p258 = scmp.ne.s32.totalorder %s253, %s255
      %p259 = scmp.eq.s32.totalorder %s20, 0
      %p260 = por %p258, %p259
      %p261 = scmp.ne.s32.totalorder %s253, %s255
      %p262 = scmp.eq.s32.totalorder %s25, 1
      %p263 = por %p261, %p262
      %p264 = scmp.ne.s32.totalorder %s255, %s256
      %p265 = scmp.eq.s32.totalorder %s25, 0
      %p266 = por %p264, %p265
      %p267 = scmp.ne.s32.totalorder %s255, %s256
      %p268 = scmp.eq.s32.totalorder %s26, 1
      %p269 = por %p267, %p268
      %p271 = scmp.ne.s32.totalorder %s256, %s270
      %p272 = scmp.eq.s32.totalorder %s26, 0
      %p273 = por %p271, %p272
      %s274 = ssub.s32 %s20, %s27
      %p275 = scmp.eq.s32.totalorder %s274, 0
      %s277 = sadd.s32 %s276, 1
      %s278 = scalar_select %p275, %s276, %s277
      %p281 = pneg %p275
      %p282 = scmp.eq.s32.totalorder %s20, 1
      %p283 = por %p281, %p282
      %p284 = scmp.ne.s32.totalorder %s276, %s279
      %p285 = scmp.eq.s32.totalorder %s20, 0
      %p286 = por %p284, %p285
      %p287 = scmp.ne.s32.totalorder %s276, %s279
      %p288 = scmp.eq.s32.totalorder %s25, 1
      %p289 = por %p287, %p288
      %p290 = scmp.ne.s32.totalorder %s279, %s280
      %p291 = scmp.eq.s32.totalorder %s25, 0
      %p292 = por %p290, %p291
      %p293 = scmp.ne.s32.totalorder %s279, %s280
      %p294 = scmp.eq.s32.totalorder %s26, 1
      %p295 = por %p293, %p294
      %p297 = scmp.ne.s32.totalorder %s280, %s296
      %p298 = scmp.eq.s32.totalorder %s26, 0
      %p299 = por %p297, %p298
      %p300 = scmp.le.s32.totalorder 1, %s20
      %p301 = scmp.lt.s32.totalorder %s20, 3
      %p302 = pnand %p300, %p301
      %p303 = pneg %p302
      // Predicated region
      $region9: #{tpu_custom_call.1} parent=5 // pred_check
        _
      $region10: #{tpu_custom_call.1} parent=5 // pred_check_branch
        %305 = sbr.rel (%p302) target = $region12
      $region11: #{tpu_custom_call.1} parent=5 // pred_region
        %s306 = ssub.s32 %s20, 1
        // Predicated region
        $region13: #{tpu_custom_call.1} parent=11 // pred_check
          %p307 = pneg %p119
        $region14: #{tpu_custom_call.1} parent=11 // pred_check_branch
          %309 = sbr.rel (%p307) target = $region16
        $region15: #{tpu_custom_call.1} parent=11 // pred_region
          _
        $region16: #{tpu_custom_call.1} parent=11 // pred_fallthru
          _
        // Predicated region
        $region17: #{tpu_custom_call.1} parent=11 // pred_check
          %p310 = pneg %p140
        $region18: #{tpu_custom_call.1} parent=11 // pred_check_branch
          %312 = sbr.rel (%p310) target = $region20
        $region19: #{tpu_custom_call.1} parent=11 // pred_region
          _
        $region20: #{tpu_custom_call.1} parent=11 // pred_fallthru
          _
        // Predicated region
        $region21: #{tpu_custom_call.1} parent=11 // pred_check
          %p313 = pneg %p161
        $region22: #{tpu_custom_call.1} parent=11 // pred_check_branch
          %315 = sbr.rel (%p313) target = $region24
        $region23: #{tpu_custom_call.1} parent=11 // pred_region
          _
        $region24: #{tpu_custom_call.1} parent=11 // pred_fallthru
          _
        // Predicated region
        $region25: #{tpu_custom_call.1} parent=11 // pred_check
          %p316 = pneg %p182
        $region26: #{tpu_custom_call.1} parent=11 // pred_check_branch
          %318 = sbr.rel (%p316) target = $region28
        $region27: #{tpu_custom_call.1} parent=11 // pred_region
          _
        $region28: #{tpu_custom_call.1} parent=11 // pred_fallthru
          _
        // Predicated region
        $region29: #{tpu_custom_call.1} parent=11 // pred_check
          %p319 = pneg %p203
        $region30: #{tpu_custom_call.1} parent=11 // pred_check_branch
          %321 = sbr.rel (%p319) target = $region32
        $region31: #{tpu_custom_call.1} parent=11 // pred_region
          _
        $region32: #{tpu_custom_call.1} parent=11 // pred_fallthru
          _
        // Predicated region
        $region33: #{tpu_custom_call.1} parent=11 // pred_check
          %p322 = pneg %p224
        $region34: #{tpu_custom_call.1} parent=11 // pred_check_branch
          %324 = sbr.rel (%p322) target = $region36
        $region35: #{tpu_custom_call.1} parent=11 // pred_region
          _
        $region36: #{tpu_custom_call.1} parent=11 // pred_fallthru
          _
        // Predicated region
        $region37: #{tpu_custom_call.1} parent=11 // pred_check
          %p325 = pneg %p245
        $region38: #{tpu_custom_call.1} parent=11 // pred_check_branch
          %327 = sbr.rel (%p325) target = $region40
        $region39: #{tpu_custom_call.1} parent=11 // pred_region
          _
        $region40: #{tpu_custom_call.1} parent=11 // pred_fallthru
          _
        // Predicated region
        $region41: #{tpu_custom_call.1} parent=11 // pred_check
          %p328 = pneg %p266
        $region42: #{tpu_custom_call.1} parent=11 // pred_check_branch
          %330 = sbr.rel (%p328) target = $region44
        $region43: #{tpu_custom_call.1} parent=11 // pred_region
          _
        $region44: #{tpu_custom_call.1} parent=11 // pred_fallthru
          _
      $region12: #{tpu_custom_call.1} parent=5 // pred_fallthru
        _
      %p331 = scmp.lt.s32.totalorder %s20, 2
      // Predicated region
      $region45: #{tpu_custom_call.1} parent=5 // pred_check
        %p332 = pneg %p331
      $region46: #{tpu_custom_call.1} parent=5 // pred_check_branch
        %334 = sbr.rel (%p332) target = $region48
      $region47: #{tpu_custom_call.1} parent=5 // pred_region
        // Predicated region
        $region49: #{tpu_custom_call.1} parent=47 // pred_check
          %p335 = pneg %p40
        $region50: #{tpu_custom_call.1} parent=47 // pred_check_branch
          %337 = sbr.rel (%p335) target = $region52
        $region51: #{tpu_custom_call.1} parent=47 // pred_region
          %p338 = scmp.lt.s32.totalorder %s20, 1
          %s339 = scalar_select %p338, %s20, 1
          %s340 = scalar_lea.vmem %s0, %s339
        $region52: #{tpu_custom_call.1} parent=47 // pred_fallthru
          _
        // Predicated region
        $region53: #{tpu_custom_call.1} parent=47 // pred_check
          %p341 = pneg %p66
        $region54: #{tpu_custom_call.1} parent=47 // pred_check_branch
          %343 = sbr.rel (%p341) target = $region56
        $region55: #{tpu_custom_call.1} parent=47 // pred_region
          %p344 = scmp.lt.s32.totalorder %s20, 1
          %s345 = scalar_select %p344, %s20, 1
          %s346 = smul.addr %s345, 4
          %s347 = scalar_lea.vmem %s1, %s346
        $region56: #{tpu_custom_call.1} parent=47 // pred_fallthru
          _
        // Predicated region
        $region57: #{tpu_custom_call.1} parent=47 // pred_check
          %p348 = pneg %p92
        $region58: #{tpu_custom_call.1} parent=47 // pred_check_branch
          %350 = sbr.rel (%p348) target = $region60
        $region59: #{tpu_custom_call.1} parent=47 // pred_region
          %p351 = scmp.lt.s32.totalorder %s20, 1
          %s352 = scalar_select %p351, %s20, 1
          %s353 = scalar_lea.vmem %s2, %s352
        $region60: #{tpu_custom_call.1} parent=47 // pred_fallthru
          _
      $region48: #{tpu_custom_call.1} parent=5 // pred_fallthru
        _
      %p354 = scmp.le.s32.totalorder 1, %s20
      %p355 = scmp.lt.s32.totalorder %s20, 3
      %p356 = pnand %p354, %p355
      %p357 = pneg %p356
      // Predicated region
      $region61: #{tpu_custom_call.1} parent=5 // pred_check
        _
      $region62: #{tpu_custom_call.1} parent=5 // pred_check_branch
        %359 = sbr.rel (%p356) target = $region64
      $region63: #{tpu_custom_call.1} parent=5 // pred_region
        %s360 = ssub.s32 %s20, 1
        %p361 = scmp.lt.s32.totalorder %s25, 1
        %s362 = scalar_select %p361, %s25, 1
        %s363 = scalar_lea.vmem %s0, %s362
        %p364 = pneg %p46
        %p365 = pneg %p43
        %p366 = scmp.lt.s32.totalorder %s25, 1
        %s367 = scalar_select %p366, %s25, 1
        %s368 = smul.addr %s367, 4
        %s369 = scalar_lea.vmem %s1, %s368
        %p370 = pneg %p72
        %p371 = pneg %p69
        %p372 = scmp.lt.s32.totalorder %s25, 1
        %s373 = scalar_select %p372, %s25, 1
        %s374 = scalar_lea.vmem %s2, %s373
        %p375 = pneg %p98
        %p376 = pneg %p95
        %p377 = pneg %p119
        %p378 = pneg %p116
        %p379 = pneg %p140
        %p380 = pneg %p137
        %p381 = pneg %p161
        %p382 = pneg %p158
        %p383 = pneg %p182
        %p384 = pneg %p179
        %p385 = pneg %p203
        %p386 = pneg %p200
        %p387 = pneg %p224
        %p388 = pneg %p221
        %p389 = pneg %p245
        %p390 = pneg %p242
        %p391 = pneg %p266
        %p392 = pneg %p263
        %p393 = pneg %p292
        %p394 = pneg %p289
        %s395 = sand.u32 %s279, 1
        %s396 = scalar_lea.sflag [#allocation3], %s395
        %s397 = sand.u32 %s279, 1
        %s398 = smul.addr %s397, 4
        %s399 = scalar_lea.vmem [#allocation2], %s398
        %p400 = scmp.lt.s32.totalorder %s25, 1
        %s401 = scalar_select %p400, %s25, 1
        %s402 = scalar_lea.vmem %s0, %s401
        %p403 = scmp.lt.s32.totalorder %s25, 1
        %s404 = scalar_select %p403, %s25, 1
        %s405 = smul.addr %s404, 4
        %s406 = scalar_lea.vmem %s1, %s405
        %p407 = scmp.lt.s32.totalorder %s25, 1
        %s408 = scalar_select %p407, %s25, 1
        %s409 = scalar_lea.vmem %s2, %s408
        %v410 = vld [vmem:[%s3] sm:$0xff]
        %v411 = vld [vmem:[%s3 + $0x8] sm:$0xff]
        %v412 = vld [vmem:[%s3 + $0x10] sm:$0xff]
        %v413 = vld [vmem:[%s3 + $0x18] sm:$0xff]
        %v414 = vld [vmem:[%s409] sm:$0x1]
        %416 = vset.pattern.permute.xlu0 0
        %417 = vperm.xlu0 %416, %v410
        %v418 = vpop.permute.xlu0 %417
        %421 = vset.pattern.permute.xlu0 0
        %422 = vperm.xlu0 %421, %v411
        %v423 = vpop.permute.xlu0 %422
        %426 = vset.pattern.permute.xlu0 0
        %427 = vperm.xlu0 %426, %v412
        %v428 = vpop.permute.xlu0 %427
        %431 = vset.pattern.permute.xlu0 0
        %432 = vperm.xlu0 %431, %v413
        %v433 = vpop.permute.xlu0 %432
        %v436 = vlaneseq
        %v437 = vshrl.u32 %v436, 7
        %v438 = vsub.s32 0, %v437
        %v439 = vrot.slane %v414, %v438
        %v441 = vmul.f32 %v418, %v439
        %v442 = vmul.f32 %v423, %v439
        %v443 = vmul.f32 %v428, %v439
        %v444 = vmul.f32 %v433, %v439
        %v445 = vld [vmem:[%s4] sm:$0xff]
        %v446 = vld [vmem:[%s4 + $0x8] sm:$0xff]
        %v447 = vld [vmem:[%s4 + $0x10] sm:$0xff]
        %v448 = vld [vmem:[%s4 + $0x18] sm:$0xff]
        %450 = vset.pattern.permute.xlu0 0
        %451 = vperm.xlu0 %450, %v445
        %v452 = vpop.permute.xlu0 %451
        %455 = vset.pattern.permute.xlu0 0
        %456 = vperm.xlu0 %455, %v446
        %v457 = vpop.permute.xlu0 %456
        %460 = vset.pattern.permute.xlu0 0
        %461 = vperm.xlu0 %460, %v447
        %v462 = vpop.permute.xlu0 %461
        %465 = vset.pattern.permute.xlu0 0
        %466 = vperm.xlu0 %465, %v448
        %v467 = vpop.permute.xlu0 %466
        %v469 = vadd.f32 %v441, %v452
        %v470 = vadd.f32 %v442, %v457
        %v471 = vadd.f32 %v443, %v462
        %v472 = vadd.f32 %v444, %v467
        %v473 = vand.u32 2147483647, %v469
        %vm474 = vcmp.le.f32.partialorder %v473, 0.7853982
        %vm475 = vcmp.lt.s32.totalorder %v469, 0
        %v476 = vand.u32 %v469, 2139095040
        %v477 = vshrl.u32 %v476, 23
        %v478 = vsub.s32 %v477, 127
        %v479 = vand.u32 2147483647, %v469
        %v480 = vand.u32 %v479, 8388607
        %v481 = vor.u32 %v480, 8388608
        %v482 = vsub.s32 0, %v481
        %v483 = vadd.s32 %v478, 1
        %vm484 = vcmp.gt.s32.totalorder %v483, 0
        %v485 = vsel %vm484, %v483, 0
        %v486 = vshrl.u32 %v485, 5
        %v487 = vand.u32 %v485, 31
        %v488 = vsub.s32 32, %v487
        %v489 = vshrl.u32 683565275, %v488
        %v490 = vshll.u32 683565275, %v487
        %v491 = vshrl.u32 2475754826, %v488
        %v492 = vor.u32 %v490, %v491
        %v493 = vshll.u32 2475754826, %v487
        %v494 = vshrl.u32 2131351028, %v488
        %v495 = vor.u32 %v493, %v494
        %v496 = vshll.u32 2131351028, %v487
        %v497 = vshrl.u32 2102212464, %v488
        %v498 = vor.u32 %v496, %v497
        %v499 = vshll.u32 2102212464, %v487
        %v500 = vshrl.u32 920167782, %v488
        %v501 = vor.u32 %v499, %v500
        %v502 = vshll.u32 920167782, %v487
        %v503 = vshrl.u32 1326507024, %v488
        %v504 = vor.u32 %v502, %v503
        %vm505 = vcmp.lt.s32.totalorder %v486, 1
        %vm506 = vcmp.lt.s32.totalorder %v486, 2
        %vm507 = vcmp.lt.s32.totalorder %v486, 3
        %vm508 = vcmp.lt.s32.totalorder %v486, 4
        %v509 = vsel %vm505, %v489, %v492
        %v510 = vsel %vm508, %v498, 2102212464
        %v511 = vsel %vm507, %v495, %v510
        %v512 = vsel %vm506, %v509, %v511
        %v513 = vsel %vm505, %v492, %v495
        %v514 = vsel %vm508, %v501, 920167782
        %v515 = vsel %vm507, %v498, %v514
        %v516 = vsel %vm506, %v513, %v515
        %v517 = vsel %vm505, %v495, %v498
        %v518 = vsel %vm508, %v504, 1326507024
        %v519 = vsel %vm507, %v501, %v518
        %v520 = vsel %vm506, %v517, %v519
        %v521 = vshll.u32 %v481, 8
        %v522 = vmul.u32.u64.compose %v521, %v520
        %v523 = vextract.low.u32 %v522
        %v524 = vextract.high.u32 %v522
        %v525 = vmul.u32.u64.compose %v521, %v516
        %v526 = vextract.low.u32 %v525
        %v527 = vextract.high.u32 %v525
        %v528 = vmul.u32 %v521, %v512
        %v529 = vadd.s32 %v524, %v526
        %vm530 = vc.u32 %v524, %v526
        %v531 = vadd.s32 %v527, 1
        %v532 = vsel %vm530, %v531, %v527
        %v533 = vadd.s32 %v528, %v532
        %v534 = vadd.s32 %v533, 536870912
        %v535 = vshrl.u32 %v534, 30
        %v536 = vshll.u32 %v535, 30
        %v537 = vsub.s32 %v533, %v536
        %vm538 = vcmp.lt.s32.totalorder %v537, 0
        %v539 = vsub.s32 0, %v537
        %v540 = vsel %vm538, %v539, %v537
        %v541 = vclz %v540
        %v542 = vsub.s32 %v541, 2
        %vm543 = vcmp.gt.s32.totalorder 0, %v542
        %v544 = vsel %vm543, 0, %v542
        %v545 = vsub.s32 32, %v544
        %v546 = vshll.u32 %v537, %v544
        %v547 = vshrl.u32 %v529, %v545
        %v548 = vor.u32 %v546, %v547
        %v549 = vsub.s32 4294967266, %v544
        %v550 = vadd.s32 %v549, 127
        %v551 = vshll.u32 %v550, 23
        %v552 = vor.u32 4788187, %v551
        %v553 = vand.u32 2147483647, %v552
        %v555 = vcvt.s32.f32 %v548
        %v556 = vmul.f32 %v555, %v553
        %v557 = vxor.u32 %v556, 2147483648
        %v558 = vsel %vm475, %v557, %v556
        %v559 = vsub.s32 4, %v535
        %v560 = vsel %vm475, %v559, %v535
        %v561 = vsel %vm474, %v469, %v558
        %v562 = vsel %vm474, 0, %v560
        %v563 = vcosq.f32.pop %v561
        %v564 = vsinq.f32.pop %v561
        %vm565 = vweird.f32 %v469
        %v566 = vand.u32 %v562, 3
        %vm567 = vcmp.lt.s32.totalorder %v566, 2
        %vm568 = vcmp.eq.s32.totalorder %v566, 0
        %v569 = vxor.u32 %v564, 2147483648
        %v570 = vsel %vm568, %v563, %v569
        %vm571 = vcmp.eq.s32.totalorder %v566, 2
        %v572 = vxor.u32 %v563, 2147483648
        %v573 = vsel %vm571, %v572, %v564
        %v574 = vsel %vm567, %v570, %v573
        %v575 = vsel %vm565, nan, %v574
        %v576 = vand.u32 2147483647, %v470
        %vm577 = vcmp.le.f32.partialorder %v576, 0.7853982
        %vm578 = vcmp.lt.s32.totalorder %v470, 0
        %v579 = vand.u32 %v470, 2139095040
        %v580 = vshrl.u32 %v579, 23
        %v581 = vsub.s32 %v580, 127
        %v582 = vand.u32 2147483647, %v470
        %v583 = vand.u32 %v582, 8388607
        %v584 = vor.u32 %v583, 8388608
        %v585 = vsub.s32 0, %v584
        %v586 = vadd.s32 %v581, 1
        %vm587 = vcmp.gt.s32.totalorder %v586, 0
        %v588 = vsel %vm587, %v586, 0
        %v589 = vshrl.u32 %v588, 5
        %v590 = vand.u32 %v588, 31
        %v591 = vsub.s32 32, %v590
        %v592 = vshrl.u32 683565275, %v591
        %v593 = vshll.u32 683565275, %v590
        %v594 = vshrl.u32 2475754826, %v591
        %v595 = vor.u32 %v593, %v594
        %v596 = vshll.u32 2475754826, %v590
        %v597 = vshrl.u32 2131351028, %v591
        %v598 = vor.u32 %v596, %v597
        %v599 = vshll.u32 2131351028, %v590
        %v600 = vshrl.u32 2102212464, %v591
        %v601 = vor.u32 %v599, %v600
        %v602 = vshll.u32 2102212464, %v590
        %v603 = vshrl.u32 920167782, %v591
        %v604 = vor.u32 %v602, %v603
        %v605 = vshll.u32 920167782, %v590
        %v606 = vshrl.u32 1326507024, %v591
        %v607 = vor.u32 %v605, %v606
        %vm608 = vcmp.lt.s32.totalorder %v589, 1
        %vm609 = vcmp.lt.s32.totalorder %v589, 2
        %vm610 = vcmp.lt.s32.totalorder %v589, 3
        %vm611 = vcmp.lt.s32.totalorder %v589, 4
        %v612 = vsel %vm608, %v592, %v595
        %v613 = vsel %vm611, %v601, 2102212464
        %v614 = vsel %vm610, %v598, %v613
        %v615 = vsel %vm609, %v612, %v614
        %v616 = vsel %vm608, %v595, %v598
        %v617 = vsel %vm611, %v604, 920167782
        %v618 = vsel %vm610, %v601, %v617
        %v619 = vsel %vm609, %v616, %v618
        %v620 = vsel %vm608, %v598, %v601
        %v621 = vsel %vm611, %v607, 1326507024
        %v622 = vsel %vm610, %v604, %v621
        %v623 = vsel %vm609, %v620, %v622
        %v624 = vshll.u32 %v584, 8
        %v625 = vmul.u32.u64.compose %v624, %v623
        %v626 = vextract.low.u32 %v625
        %v627 = vextract.high.u32 %v625
        %v628 = vmul.u32.u64.compose %v624, %v619
        %v629 = vextract.low.u32 %v628
        %v630 = vextract.high.u32 %v628
        %v631 = vmul.u32 %v624, %v615
        %v632 = vadd.s32 %v627, %v629
        %vm633 = vc.u32 %v627, %v629
        %v634 = vadd.s32 %v630, 1
        %v635 = vsel %vm633, %v634, %v630
        %v636 = vadd.s32 %v631, %v635
        %v637 = vadd.s32 %v636, 536870912
        %v638 = vshrl.u32 %v637, 30
        %v639 = vshll.u32 %v638, 30
        %v640 = vsub.s32 %v636, %v639
        %vm641 = vcmp.lt.s32.totalorder %v640, 0
        %v642 = vsub.s32 0, %v640
        %v643 = vsel %vm641, %v642, %v640
        %v644 = vclz %v643
        %v645 = vsub.s32 %v644, 2
        %vm646 = vcmp.gt.s32.totalorder 0, %v645
        %v647 = vsel %vm646, 0, %v645
        %v648 = vsub.s32 32, %v647
        %v649 = vshll.u32 %v640, %v647
        %v650 = vshrl.u32 %v632, %v648
        %v651 = vor.u32 %v649, %v650
        %v652 = vsub.s32 4294967266, %v647
        %v653 = vadd.s32 %v652, 127
        %v654 = vshll.u32 %v653, 23
        %v655 = vor.u32 4788187, %v654
        %v656 = vand.u32 2147483647, %v655
        %v658 = vcvt.s32.f32 %v651
        %v659 = vmul.f32 %v658, %v656
        %v660 = vxor.u32 %v659, 2147483648
        %v661 = vsel %vm578, %v660, %v659
        %v662 = vsub.s32 4, %v638
        %v663 = vsel %vm578, %v662, %v638
        %v664 = vsel %vm577, %v470, %v661
        %v665 = vsel %vm577, 0, %v663
        %v666 = vcosq.f32.pop %v664
        %v667 = vsinq.f32.pop %v664
        %vm668 = vweird.f32 %v470
        %v669 = vand.u32 %v665, 3
        %vm670 = vcmp.lt.s32.totalorder %v669, 2
        %vm671 = vcmp.eq.s32.totalorder %v669, 0
        %v672 = vxor.u32 %v667, 2147483648
        %v673 = vsel %vm671, %v666, %v672
        %vm674 = vcmp.eq.s32.totalorder %v669, 2
        %v675 = vxor.u32 %v666, 2147483648
        %v676 = vsel %vm674, %v675, %v667
        %v677 = vsel %vm670, %v673, %v676
        %v678 = vsel %vm668, nan, %v677
        %v679 = vand.u32 2147483647, %v471
        %vm680 = vcmp.le.f32.partialorder %v679, 0.7853982
        %vm681 = vcmp.lt.s32.totalorder %v471, 0
        %v682 = vand.u32 %v471, 2139095040
        %v683 = vshrl.u32 %v682, 23
        %v684 = vsub.s32 %v683, 127
        %v685 = vand.u32 2147483647, %v471
        %v686 = vand.u32 %v685, 8388607
        %v687 = vor.u32 %v686, 8388608
        %v688 = vsub.s32 0, %v687
        %v689 = vadd.s32 %v684, 1
        %vm690 = vcmp.gt.s32.totalorder %v689, 0
        %v691 = vsel %vm690, %v689, 0
        %v692 = vshrl.u32 %v691, 5
        %v693 = vand.u32 %v691, 31
        %v694 = vsub.s32 32, %v693
        %v695 = vshrl.u32 683565275, %v694
        %v696 = vshll.u32 683565275, %v693
        %v697 = vshrl.u32 2475754826, %v694
        %v698 = vor.u32 %v696, %v697
        %v699 = vshll.u32 2475754826, %v693
        %v700 = vshrl.u32 2131351028, %v694
        %v701 = vor.u32 %v699, %v700
        %v702 = vshll.u32 2131351028, %v693
        %v703 = vshrl.u32 2102212464, %v694
        %v704 = vor.u32 %v702, %v703
        %v705 = vshll.u32 2102212464, %v693
        %v706 = vshrl.u32 920167782, %v694
        %v707 = vor.u32 %v705, %v706
        %v708 = vshll.u32 920167782, %v693
        %v709 = vshrl.u32 1326507024, %v694
        %v710 = vor.u32 %v708, %v709
        %vm711 = vcmp.lt.s32.totalorder %v692, 1
        %vm712 = vcmp.lt.s32.totalorder %v692, 2
        %vm713 = vcmp.lt.s32.totalorder %v692, 3
        %vm714 = vcmp.lt.s32.totalorder %v692, 4
        %v715 = vsel %vm711, %v695, %v698
        %v716 = vsel %vm714, %v704, 2102212464
        %v717 = vsel %vm713, %v701, %v716
        %v718 = vsel %vm712, %v715, %v717
        %v719 = vsel %vm711, %v698, %v701
        %v720 = vsel %vm714, %v707, 920167782
        %v721 = vsel %vm713, %v704, %v720
        %v722 = vsel %vm712, %v719, %v721
        %v723 = vsel %vm711, %v701, %v704
        %v724 = vsel %vm714, %v710, 1326507024
        %v725 = vsel %vm713, %v707, %v724
        %v726 = vsel %vm712, %v723, %v725
        %v727 = vshll.u32 %v687, 8
        %v728 = vmul.u32.u64.compose %v727, %v726
        %v729 = vextract.low.u32 %v728
        %v730 = vextract.high.u32 %v728
        %v731 = vmul.u32.u64.compose %v727, %v722
        %v732 = vextract.low.u32 %v731
        %v733 = vextract.high.u32 %v731
        %v734 = vmul.u32 %v727, %v718
        %v735 = vadd.s32 %v730, %v732
        %vm736 = vc.u32 %v730, %v732
        %v737 = vadd.s32 %v733, 1
        %v738 = vsel %vm736, %v737, %v733
        %v739 = vadd.s32 %v734, %v738
        %v740 = vadd.s32 %v739, 536870912
        %v741 = vshrl.u32 %v740, 30
        %v742 = vshll.u32 %v741, 30
        %v743 = vsub.s32 %v739, %v742
        %vm744 = vcmp.lt.s32.totalorder %v743, 0
        %v745 = vsub.s32 0, %v743
        %v746 = vsel %vm744, %v745, %v743
        %v747 = vclz %v746
        %v748 = vsub.s32 %v747, 2
        %vm749 = vcmp.gt.s32.totalorder 0, %v748
        %v750 = vsel %vm749, 0, %v748
        %v751 = vsub.s32 32, %v750
        %v752 = vshll.u32 %v743, %v750
        %v753 = vshrl.u32 %v735, %v751
        %v754 = vor.u32 %v752, %v753
        %v755 = vsub.s32 4294967266, %v750
        %v756 = vadd.s32 %v755, 127
        %v757 = vshll.u32 %v756, 23
        %v758 = vor.u32 4788187, %v757
        %v759 = vand.u32 2147483647, %v758
        %v761 = vcvt.s32.f32 %v754
        %v762 = vmul.f32 %v761, %v759
        %v763 = vxor.u32 %v762, 2147483648
        %v764 = vsel %vm681, %v763, %v762
        %v765 = vsub.s32 4, %v741
        %v766 = vsel %vm681, %v765, %v741
        %v767 = vsel %vm680, %v471, %v764
        %v768 = vsel %vm680, 0, %v766
        %v769 = vcosq.f32.pop %v767
        %v770 = vsinq.f32.pop %v767
        %vm771 = vweird.f32 %v471
        %v772 = vand.u32 %v768, 3
        %vm773 = vcmp.lt.s32.totalorder %v772, 2
        %vm774 = vcmp.eq.s32.totalorder %v772, 0
        %v775 = vxor.u32 %v770, 2147483648
        %v776 = vsel %vm774, %v769, %v775
        %vm777 = vcmp.eq.s32.totalorder %v772, 2
        %v778 = vxor.u32 %v769, 2147483648
        %v779 = vsel %vm777, %v778, %v770
        %v780 = vsel %vm773, %v776, %v779
        %v781 = vsel %vm771, nan, %v780
        %v782 = vand.u32 2147483647, %v472
        %vm783 = vcmp.le.f32.partialorder %v782, 0.7853982
        %vm784 = vcmp.lt.s32.totalorder %v472, 0
        %v785 = vand.u32 %v472, 2139095040
        %v786 = vshrl.u32 %v785, 23
        %v787 = vsub.s32 %v786, 127
        %v788 = vand.u32 2147483647, %v472
        %v789 = vand.u32 %v788, 8388607
        %v790 = vor.u32 %v789, 8388608
        %v791 = vsub.s32 0, %v790
        %v792 = vadd.s32 %v787, 1
        %vm793 = vcmp.gt.s32.totalorder %v792, 0
        %v794 = vsel %vm793, %v792, 0
        %v795 = vshrl.u32 %v794, 5
        %v796 = vand.u32 %v794, 31
        %v797 = vsub.s32 32, %v796
        %v798 = vshrl.u32 683565275, %v797
        %v799 = vshll.u32 683565275, %v796
        %v800 = vshrl.u32 2475754826, %v797
        %v801 = vor.u32 %v799, %v800
        %v802 = vshll.u32 2475754826, %v796
        %v803 = vshrl.u32 2131351028, %v797
        %v804 = vor.u32 %v802, %v803
        %v805 = vshll.u32 2131351028, %v796
        %v806 = vshrl.u32 2102212464, %v797
        %v807 = vor.u32 %v805, %v806
        %v808 = vshll.u32 2102212464, %v796
        %v809 = vshrl.u32 920167782, %v797
        %v810 = vor.u32 %v808, %v809
        %v811 = vshll.u32 920167782, %v796
        %v812 = vshrl.u32 1326507024, %v797
        %v813 = vor.u32 %v811, %v812
        %vm814 = vcmp.lt.s32.totalorder %v795, 1
        %vm815 = vcmp.lt.s32.totalorder %v795, 2
        %vm816 = vcmp.lt.s32.totalorder %v795, 3
        %vm817 = vcmp.lt.s32.totalorder %v795, 4
        %v818 = vsel %vm814, %v798, %v801
        %v819 = vsel %vm817, %v807, 2102212464
        %v820 = vsel %vm816, %v804, %v819
        %v821 = vsel %vm815, %v818, %v820
        %v822 = vsel %vm814, %v801, %v804
        %v823 = vsel %vm817, %v810, 920167782
        %v824 = vsel %vm816, %v807, %v823
        %v825 = vsel %vm815, %v822, %v824
        %v826 = vsel %vm814, %v804, %v807
        %v827 = vsel %vm817, %v813, 1326507024
        %v828 = vsel %vm816, %v810, %v827
        %v829 = vsel %vm815, %v826, %v828
        %v830 = vshll.u32 %v790, 8
        %v831 = vmul.u32.u64.compose %v830, %v829
        %v832 = vextract.low.u32 %v831
        %v833 = vextract.high.u32 %v831
        %v834 = vmul.u32.u64.compose %v830, %v825
        %v835 = vextract.low.u32 %v834
        %v836 = vextract.high.u32 %v834
        %v837 = vmul.u32 %v830, %v821
        %v838 = vadd.s32 %v833, %v835
        %vm839 = vc.u32 %v833, %v835
        %v840 = vadd.s32 %v836, 1
        %v841 = vsel %vm839, %v840, %v836
        %v842 = vadd.s32 %v837, %v841
        %v843 = vadd.s32 %v842, 536870912
        %v844 = vshrl.u32 %v843, 30
        %v845 = vshll.u32 %v844, 30
        %v846 = vsub.s32 %v842, %v845
        %vm847 = vcmp.lt.s32.totalorder %v846, 0
        %v848 = vsub.s32 0, %v846
        %v849 = vsel %vm847, %v848, %v846
        %v850 = vclz %v849
        %v851 = vsub.s32 %v850, 2
        %vm852 = vcmp.gt.s32.totalorder 0, %v851
        %v853 = vsel %vm852, 0, %v851
        %v854 = vsub.s32 32, %v853
        %v855 = vshll.u32 %v846, %v853
        %v856 = vshrl.u32 %v838, %v854
        %v857 = vor.u32 %v855, %v856
        %v858 = vsub.s32 4294967266, %v853
        %v859 = vadd.s32 %v858, 127
        %v860 = vshll.u32 %v859, 23
        %v861 = vor.u32 4788187, %v860
        %v862 = vand.u32 2147483647, %v861
        %v864 = vcvt.s32.f32 %v857
        %v865 = vmul.f32 %v864, %v862
        %v866 = vxor.u32 %v865, 2147483648
        %v867 = vsel %vm784, %v866, %v865
        %v868 = vsub.s32 4, %v844
        %v869 = vsel %vm784, %v868, %v844
        %v870 = vsel %vm783, %v472, %v867
        %v871 = vsel %vm783, 0, %v869
        %v872 = vcosq.f32.pop %v870
        %v873 = vsinq.f32.pop %v870
        %vm874 = vweird.f32 %v472
        %v875 = vand.u32 %v871, 3
        %vm876 = vcmp.lt.s32.totalorder %v875, 2
        %vm877 = vcmp.eq.s32.totalorder %v875, 0
        %v878 = vxor.u32 %v873, 2147483648
        %v879 = vsel %vm877, %v872, %v878
        %vm880 = vcmp.eq.s32.totalorder %v875, 2
        %v881 = vxor.u32 %v872, 2147483648
        %v882 = vsel %vm880, %v881, %v873
        %v883 = vsel %vm876, %v879, %v882
        %v884 = vsel %vm874, nan, %v883
        %v885 = vld [vmem:[%s7] sm:$0xff]
        %v886 = vld [vmem:[%s7 + $0x8] sm:$0xff]
        %v887 = vld [vmem:[%s7 + $0x10] sm:$0xff]
        %v888 = vld [vmem:[%s7 + $0x18] sm:$0xff]
        %v889 = vld [vmem:[%s6] sm:$0xff]
        %v890 = vld [vmem:[%s6 + $0x8] sm:$0xff]
        %v891 = vld [vmem:[%s6 + $0x10] sm:$0xff]
        %v892 = vld [vmem:[%s6 + $0x18] sm:$0xff]
        %v893 = vld [vmem:[%s406] sm:$0x7]
        %vm894 = vcmask 23552
        %v896 = vsel %vm894, %v889, 0
        %v899 = vsel %vm894, %v890, 0
        %v902 = vsel %vm894, %v891, 0
        %v905 = vsel %vm894, %v892, 0
        %vm907 = vcmask 1042432
        %v909 = vsel %vm907, %v893, 0
        %911 = vmatprep.subr.mxu0 0.0
        %912 = vmatpush1.msra.mxu0 0.0
        %913 = vmatprep.subr.mxu0 0.0
        %914 = vmatpush1.msra.mxu0 0.0
        %915 = vmatprep.subr.mxu0 0.0
        %916 = vmatpush1.msra.mxu0 0.0
        %917 = vmatprep.subr.mxu0 0.0
        %918 = vmatpush1.msra.mxu0 0.0
        %919 = vmatprep.subr.mxu0 0.0
        %920 = vmatpush1.msra.mxu0 0.0
        %921 = vmatprep.subr.mxu0 0.0
        %922 = vmatpush1.msra.mxu0 0.0
        %923 = vmatprep.subr.mxu0 0.0
        %924 = vmatpush1.msra.mxu0 0.0
        %925 = vmatprep.subr.mxu0 0.0
        %926 = vmatpush1.msra.mxu0 0.0
        %927 = vmatprep.subr.mxu0 0.0
        %928 = vmatpush1.msra.mxu0 0.0
        %929 = vmatprep.subr.mxu0 0.0
        %930 = vmatpush1.msra.mxu0 0.0
        %931 = vmatprep.subr.mxu0 0.0
        %932 = vmatpush1.msra.mxu0 0.0
        %933 = vmatprep.subr.mxu0 0.0
        %934 = vmatpush1.msra.mxu0 0.0
        %935 = vmatprep.subr.mxu0 0.0
        %936 = vmatpush1.msra.mxu0 0.0
        %937 = vmatprep.subr.mxu0 0.0
        %938 = vmatpush1.msra.mxu0 0.0
        %939 = vmatprep.subr.mxu0 0.0
        %940 = vmatpush1.msra.mxu0 0.0
        %941 = vmatprep.subr.mxu0 0.0
        %942 = vmatpush1.msra.mxu0 %v909
        %943 = vmatprep.subr.mxu0 0.0
        %944 = vmatpush2.msra.mxu0 0.0
        %945 = vmatprep.subr.mxu0 0.0
        %946 = vmatpush2.msra.mxu0 0.0
        %947 = vmatprep.subr.mxu0 0.0
        %948 = vmatpush2.msra.mxu0 0.0
        %949 = vmatprep.subr.mxu0 0.0
        %950 = vmatpush2.msra.mxu0 0.0
        %951 = vmatprep.subr.mxu0 0.0
        %952 = vmatpush2.msra.mxu0 0.0
        %953 = vmatprep.subr.mxu0 0.0
        %954 = vmatpush2.msra.mxu0 0.0
        %955 = vmatprep.subr.mxu0 0.0
        %956 = vmatpush2.msra.mxu0 0.0
        %957 = vmatprep.subr.mxu0 0.0
        %958 = vmatpush2.msra.mxu0 0.0
        %959 = vmatprep.subr.mxu0 0.0
        %960 = vmatpush2.msra.mxu0 0.0
        %961 = vmatprep.subr.mxu0 0.0
        %962 = vmatpush2.msra.mxu0 0.0
        %963 = vmatprep.subr.mxu0 0.0
        %964 = vmatpush2.msra.mxu0 0.0
        %965 = vmatprep.subr.mxu0 0.0
        %966 = vmatpush2.msra.mxu0 0.0
        %967 = vmatprep.subr.mxu0 0.0
        %968 = vmatpush2.msra.mxu0 0.0
        %969 = vmatprep.subr.mxu0 0.0
        %970 = vmatpush2.msra.mxu0 0.0
        %971 = vmatprep.subr.mxu0 0.0
        %972 = vmatpush2.msra.mxu0 0.0
        %973 = vmatprep.subr.mxu0 0.0
        %974 = vmatpush2.msra.mxu0 0.0
        %975 = vmatprep.mubr.f32.mxu0 0.0
        %976 = vmatmul.mubr.f32.gmra.mxu0 %v896
        %v977 = vpop.f32.mrf.mxu0
        %v978 = vadd.f32 0.0, %v977
        %v979 = vpop.f32.mrf.mxu0
        %980 = vmatprep.mubr.f32.mxu0 0.0
        %981 = vmatmul.mubr.f32.gmra.mxu0 %v899
        %v982 = vpop.f32.mrf.mxu0
        %v983 = vadd.f32 0.0, %v982
        %v984 = vpop.f32.mrf.mxu0
        %985 = vmatprep.mubr.f32.mxu0 0.0
        %986 = vmatmul.mubr.f32.gmra.mxu0 %v902
        %v987 = vpop.f32.mrf.mxu0
        %v988 = vadd.f32 0.0, %v987
        %v989 = vpop.f32.mrf.mxu0
        %990 = vmatprep.mubr.f32.mxu0 0.0
        %991 = vmatmul.mubr.f32.gmra.mxu0 %v905
        %v992 = vpop.f32.mrf.mxu0
        %v993 = vadd.f32 0.0, %v992
        %v994 = vpop.f32.mrf.mxu0
        %995 = vdwg.mxu0
        %vm996 = vcmask 261120
        %v998 = vsel %vm996, %v885, 0
        %v1001 = vsel %vm996, %v886, 0
        %v1004 = vsel %vm996, %v887, 0
        %v1007 = vsel %vm996, %v888, 0
        %1009 = vmatprep.subr.mxu0 0.0
        %1010 = vmatpush1.msra.mxu0 0.0
        %1011 = vmatprep.subr.mxu0 0.0
        %1012 = vmatpush1.msra.mxu0 0.0
        %1013 = vmatprep.subr.mxu0 0.0
        %1014 = vmatpush1.msra.mxu0 0.0
        %1015 = vmatprep.subr.mxu0 0.0
        %1016 = vmatpush1.msra.mxu0 0.0
        %1017 = vmatprep.subr.mxu0 0.0
        %1018 = vmatpush1.msra.mxu0 0.0
        %1019 = vmatprep.subr.mxu0 0.0
        %1020 = vmatpush1.msra.mxu0 0.0
        %1021 = vmatprep.subr.mxu0 0.0
        %1022 = vmatpush1.msra.mxu0 0.0
        %1023 = vmatprep.subr.mxu0 0.0
        %1024 = vmatpush1.msra.mxu0 0.0
        %1025 = vmatprep.subr.mxu0 0.0
        %1026 = vmatpush1.msra.mxu0 0.0
        %1027 = vmatprep.subr.mxu0 0.0
        %1028 = vmatpush1.msra.mxu0 0.0
        %1029 = vmatprep.subr.mxu0 0.0
        %1030 = vmatpush1.msra.mxu0 0.0
        %1031 = vmatprep.subr.mxu0 0.0
        %1032 = vmatpush1.msra.mxu0 0.0
        %1033 = vmatprep.subr.mxu0 0.0
        %1034 = vmatpush1.msra.mxu0 %v884
        %1035 = vmatprep.subr.mxu0 0.0
        %1036 = vmatpush1.msra.mxu0 %v781
        %1037 = vmatprep.subr.mxu0 0.0
        %1038 = vmatpush1.msra.mxu0 %v678
        %1039 = vmatprep.subr.mxu0 0.0
        %1040 = vmatpush1.msra.mxu0 %v575
        %1041 = vmatprep.subr.mxu0 0.0
        %1042 = vmatpush2.msra.mxu0 0.0
        %1043 = vmatprep.subr.mxu0 0.0
        %1044 = vmatpush2.msra.mxu0 0.0
        %1045 = vmatprep.subr.mxu0 0.0
        %1046 = vmatpush2.msra.mxu0 0.0
        %1047 = vmatprep.subr.mxu0 0.0
        %1048 = vmatpush2.msra.mxu0 0.0
        %1049 = vmatprep.subr.mxu0 0.0
        %1050 = vmatpush2.msra.mxu0 0.0
        %1051 = vmatprep.subr.mxu0 0.0
        %1052 = vmatpush2.msra.mxu0 0.0
        %1053 = vmatprep.subr.mxu0 0.0
        %1054 = vmatpush2.msra.mxu0 0.0
        %1055 = vmatprep.subr.mxu0 0.0
        %1056 = vmatpush2.msra.mxu0 0.0
        %1057 = vmatprep.subr.mxu0 0.0
        %1058 = vmatpush2.msra.mxu0 0.0
        %1059 = vmatprep.subr.mxu0 0.0
        %1060 = vmatpush2.msra.mxu0 0.0
        %1061 = vmatprep.subr.mxu0 0.0
        %1062 = vmatpush2.msra.mxu0 0.0
        %1063 = vmatprep.subr.mxu0 0.0
        %1064 = vmatpush2.msra.mxu0 0.0
        %1065 = vmatprep.subr.mxu0 0.0
        %1066 = vmatpush2.msra.mxu0 0.0
        %1067 = vmatprep.subr.mxu0 0.0
        %1068 = vmatpush2.msra.mxu0 0.0
        %1069 = vmatprep.subr.mxu0 0.0
        %1070 = vmatpush2.msra.mxu0 0.0
        %1071 = vmatprep.subr.mxu0 0.0
        %1072 = vmatpush2.msra.mxu0 0.0
        %1073 = vmatprep.mubr.f32.mxu0 0.0
        %1074 = vmatmul.mubr.f32.gmra.mxu0 %v998
        %v1075 = vpop.f32.mrf.mxu0
        %v1076 = vadd.f32 %v978, %v1075
        %v1077 = vpop.f32.mrf.mxu0
        %1078 = vmatprep.mubr.f32.mxu0 0.0
        %1079 = vmatmul.mubr.f32.gmra.mxu0 %v1001
        %v1080 = vpop.f32.mrf.mxu0
        %v1081 = vadd.f32 %v983, %v1080
        %v1082 = vpop.f32.mrf.mxu0
        %1083 = vmatprep.mubr.f32.mxu0 0.0
        %1084 = vmatmul.mubr.f32.gmra.mxu0 %v1004
        %v1085 = vpop.f32.mrf.mxu0
        %v1086 = vadd.f32 %v988, %v1085
        %v1087 = vpop.f32.mrf.mxu0
        %1088 = vmatprep.mubr.f32.mxu0 0.0
        %1089 = vmatmul.mubr.f32.gmra.mxu0 %v1007
        %v1090 = vpop.f32.mrf.mxu0
        %v1091 = vadd.f32 %v993, %v1090
        %v1092 = vpop.f32.mrf.mxu0
        %1093 = vdwg.mxu0
        %v1094 = vld [vmem:[%s5] sm:$0xff]
        %v1095 = vld [vmem:[%s5 + $0x8] sm:$0xff]
        %v1096 = vld [vmem:[%s5 + $0x10] sm:$0xff]
        %v1097 = vld [vmem:[%s5 + $0x18] sm:$0xff]
        %v1098 = vld [vmem:[%s402] sm:$0x1]
        %vm1099 = vcmask 7168
        %v1101 = vsel %vm1099, %v1094, 0
        %v1104 = vsel %vm1099, %v1095, 0
        %v1107 = vsel %vm1099, %v1096, 0
        %v1110 = vsel %vm1099, %v1097, 0
        %vm1112 = vcmask 1040384
        %v1114 = vsel %vm1112, %v1098, 0
        %1116 = vmatprep.subr.mxu0 0.0
        %1117 = vmatpush1.msra.mxu0 0.0
        %1118 = vmatprep.subr.mxu0 0.0
        %1119 = vmatpush1.msra.mxu0 0.0
        %1120 = vmatprep.subr.mxu0 0.0
        %1121 = vmatpush1.msra.mxu0 0.0
        %1122 = vmatprep.subr.mxu0 0.0
        %1123 = vmatpush1.msra.mxu0 0.0
        %1124 = vmatprep.subr.mxu0 0.0
        %1125 = vmatpush1.msra.mxu0 0.0
        %1126 = vmatprep.subr.mxu0 0.0
        %1127 = vmatpush1.msra.mxu0 0.0
        %1128 = vmatprep.subr.mxu0 0.0
        %1129 = vmatpush1.msra.mxu0 0.0
        %1130 = vmatprep.subr.mxu0 0.0
        %1131 = vmatpush1.msra.mxu0 0.0
        %1132 = vmatprep.subr.mxu0 0.0
        %1133 = vmatpush1.msra.mxu0 0.0
        %1134 = vmatprep.subr.mxu0 0.0
        %1135 = vmatpush1.msra.mxu0 0.0
        %1136 = vmatprep.subr.mxu0 0.0
        %1137 = vmatpush1.msra.mxu0 0.0
        %1138 = vmatprep.subr.mxu0 0.0
        %1139 = vmatpush1.msra.mxu0 0.0
        %1140 = vmatprep.subr.mxu0 0.0
        %1141 = vmatpush1.msra.mxu0 0.0
        %1142 = vmatprep.subr.mxu0 0.0
        %1143 = vmatpush1.msra.mxu0 0.0
        %1144 = vmatprep.subr.mxu0 0.0
        %1145 = vmatpush1.msra.mxu0 0.0
        %1146 = vmatprep.subr.mxu0 0.0
        %1147 = vmatpush1.msra.mxu0 %v1114
        %1148 = vmatprep.subr.mxu0 0.0
        %1149 = vmatpush2.msra.mxu0 0.0
        %1150 = vmatprep.subr.mxu0 0.0
        %1151 = vmatpush2.msra.mxu0 0.0
        %1152 = vmatprep.subr.mxu0 0.0
        %1153 = vmatpush2.msra.mxu0 0.0
        %1154 = vmatprep.subr.mxu0 0.0
        %1155 = vmatpush2.msra.mxu0 0.0
        %1156 = vmatprep.subr.mxu0 0.0
        %1157 = vmatpush2.msra.mxu0 0.0
        %1158 = vmatprep.subr.mxu0 0.0
        %1159 = vmatpush2.msra.mxu0 0.0
        %1160 = vmatprep.subr.mxu0 0.0
        %1161 = vmatpush2.msra.mxu0 0.0
        %1162 = vmatprep.subr.mxu0 0.0
        %1163 = vmatpush2.msra.mxu0 0.0
        %1164 = vmatprep.subr.mxu0 0.0
        %1165 = vmatpush2.msra.mxu0 0.0
        %1166 = vmatprep.subr.mxu0 0.0
        %1167 = vmatpush2.msra.mxu0 0.0
        %1168 = vmatprep.subr.mxu0 0.0
        %1169 = vmatpush2.msra.mxu0 0.0
        %1170 = vmatprep.subr.mxu0 0.0
        %1171 = vmatpush2.msra.mxu0 0.0
        %1172 = vmatprep.subr.mxu0 0.0
        %1173 = vmatpush2.msra.mxu0 0.0
        %1174 = vmatprep.subr.mxu0 0.0
        %1175 = vmatpush2.msra.mxu0 0.0
        %1176 = vmatprep.subr.mxu0 0.0
        %1177 = vmatpush2.msra.mxu0 0.0
        %1178 = vmatprep.subr.mxu0 0.0
        %1179 = vmatpush2.msra.mxu0 0.0
        %1180 = vmatprep.mubr.f32.mxu0 0.0
        %1181 = vmatmul.mubr.f32.gmra.mxu0 %v1101
        %v1182 = vpop.f32.mrf.mxu0
        %v1183 = vadd.f32 0.0, %v1182
        %v1184 = vpop.f32.mrf.mxu0
        %1185 = vmatprep.mubr.f32.mxu0 0.0
        %1186 = vmatmul.mubr.f32.gmra.mxu0 %v1104
        %v1187 = vpop.f32.mrf.mxu0
        %v1188 = vadd.f32 0.0, %v1187
        %v1189 = vpop.f32.mrf.mxu0
        %1190 = vmatprep.mubr.f32.mxu0 0.0
        %1191 = vmatmul.mubr.f32.gmra.mxu0 %v1107
        %v1192 = vpop.f32.mrf.mxu0
        %v1193 = vadd.f32 0.0, %v1192
        %v1194 = vpop.f32.mrf.mxu0
        %1195 = vmatprep.mubr.f32.mxu0 0.0
        %1196 = vmatmul.mubr.f32.gmra.mxu0 %v1110
        %v1197 = vpop.f32.mrf.mxu0
        %v1198 = vadd.f32 0.0, %v1197
        %v1199 = vpop.f32.mrf.mxu0
        %1200 = vdwg.mxu0
        %v1201 = vadd.f32 %v1076, %v1183
        %v1202 = vadd.f32 %v1081, %v1188
        %v1203 = vadd.f32 %v1086, %v1193
        %v1204 = vadd.f32 %v1091, %v1198
        %v1205 = vld [vmem:[%s8] sm:$0xff]
        %v1206 = vld [vmem:[%s8 + $0x8] sm:$0xff]
        %v1207 = vld [vmem:[%s8 + $0x10] sm:$0xff]
        %v1208 = vld [vmem:[%s8 + $0x18] sm:$0xff]
        %1210 = vset.pattern.permute.xlu0 0
        %1211 = vperm.xlu0 %1210, %v1205
        %v1212 = vpop.permute.xlu0 %1211
        %1215 = vset.pattern.permute.xlu0 0
        %1216 = vperm.xlu0 %1215, %v1206
        %v1217 = vpop.permute.xlu0 %1216
        %1220 = vset.pattern.permute.xlu0 0
        %1221 = vperm.xlu0 %1220, %v1207
        %v1222 = vpop.permute.xlu0 %1221
        %1225 = vset.pattern.permute.xlu0 0
        %1226 = vperm.xlu0 %1225, %v1208
        %v1227 = vpop.permute.xlu0 %1226
        %v1229 = vadd.f32 %v1201, %v1212
        %v1230 = vadd.f32 %v1202, %v1217
        %v1231 = vadd.f32 %v1203, %v1222
        %v1232 = vadd.f32 %v1204, %v1227
        %v1233 = vmul.f32 %v1229, 0.5
        %v1234 = vmul.f32 %v1230, 0.5
        %v1235 = vmul.f32 %v1231, 0.5
        %v1236 = vmul.f32 %v1232, 0.5
        %v1237 = vmul.f32 %v1229, 0.70710677
        %v1238 = vmul.f32 %v1230, 0.70710677
        %v1239 = vmul.f32 %v1231, 0.70710677
        %v1240 = vmul.f32 %v1232, 0.70710677
        %v1241 = verf.f32.pop %v1237
        %v1242 = verf.f32.pop %v1238
        %v1243 = verf.f32.pop %v1239
        %v1244 = verf.f32.pop %v1240
        %v1245 = vadd.f32 %v1241, 1.0
        %v1246 = vadd.f32 %v1242, 1.0
        %v1247 = vadd.f32 %v1243, 1.0
        %v1248 = vadd.f32 %v1244, 1.0
        %v1249 = vmul.f32 %v1233, %v1245
        %v1250 = vmul.f32 %v1234, %v1246
        %v1251 = vmul.f32 %v1235, %v1247
        %v1252 = vmul.f32 %v1236, %v1248
        %v1253 = vld [vmem:[%s9] sm:$0xf]
        %v1254 = vld [vmem:[%s10] sm:$0xf]
        %1256 = vset.pattern.permute.xlu0 0
        %1257 = vperm.xlu0 %1256, %v1254
        %v1258 = vpop.permute.xlu0 %1257
        %v1261 = vsel %vm996, %v1253, 0
        %1263 = vmatprep.subr.mxu0 0.0
        %1264 = vmatpush1.msra.mxu0 0.0
        %1265 = vmatprep.subr.mxu0 0.0
        %1266 = vmatpush1.msra.mxu0 0.0
        %1267 = vmatprep.subr.mxu0 0.0
        %1268 = vmatpush1.msra.mxu0 0.0
        %1269 = vmatprep.subr.mxu0 0.0
        %1270 = vmatpush1.msra.mxu0 0.0
        %1271 = vmatprep.subr.mxu0 0.0
        %1272 = vmatpush1.msra.mxu0 0.0
        %1273 = vmatprep.subr.mxu0 0.0
        %1274 = vmatpush1.msra.mxu0 0.0
        %1275 = vmatprep.subr.mxu0 0.0
        %1276 = vmatpush1.msra.mxu0 0.0
        %1277 = vmatprep.subr.mxu0 0.0
        %1278 = vmatpush1.msra.mxu0 0.0
        %1279 = vmatprep.subr.mxu0 0.0
        %1280 = vmatpush1.msra.mxu0 0.0
        %1281 = vmatprep.subr.mxu0 0.0
        %1282 = vmatpush1.msra.mxu0 0.0
        %1283 = vmatprep.subr.mxu0 0.0
        %1284 = vmatpush1.msra.mxu0 0.0
        %1285 = vmatprep.subr.mxu0 0.0
        %1286 = vmatpush1.msra.mxu0 0.0
        %1287 = vmatprep.subr.mxu0 0.0
        %1288 = vmatpush1.msra.mxu0 %v1252
        %1289 = vmatprep.subr.mxu0 0.0
        %1290 = vmatpush1.msra.mxu0 %v1251
        %1291 = vmatprep.subr.mxu0 0.0
        %1292 = vmatpush1.msra.mxu0 %v1250
        %1293 = vmatprep.subr.mxu0 0.0
        %1294 = vmatpush1.msra.mxu0 %v1249
        %1295 = vmatprep.subr.mxu0 0.0
        %1296 = vmatpush2.msra.mxu0 0.0
        %1297 = vmatprep.subr.mxu0 0.0
        %1298 = vmatpush2.msra.mxu0 0.0
        %1299 = vmatprep.subr.mxu0 0.0
        %1300 = vmatpush2.msra.mxu0 0.0
        %1301 = vmatprep.subr.mxu0 0.0
        %1302 = vmatpush2.msra.mxu0 0.0
        %1303 = vmatprep.subr.mxu0 0.0
        %1304 = vmatpush2.msra.mxu0 0.0
        %1305 = vmatprep.subr.mxu0 0.0
        %1306 = vmatpush2.msra.mxu0 0.0
        %1307 = vmatprep.subr.mxu0 0.0
        %1308 = vmatpush2.msra.mxu0 0.0
        %1309 = vmatprep.subr.mxu0 0.0
        %1310 = vmatpush2.msra.mxu0 0.0
        %1311 = vmatprep.subr.mxu0 0.0
        %1312 = vmatpush2.msra.mxu0 0.0
        %1313 = vmatprep.subr.mxu0 0.0
        %1314 = vmatpush2.msra.mxu0 0.0
        %1315 = vmatprep.subr.mxu0 0.0
        %1316 = vmatpush2.msra.mxu0 0.0
        %1317 = vmatprep.subr.mxu0 0.0
        %1318 = vmatpush2.msra.mxu0 0.0
        %1319 = vmatprep.subr.mxu0 0.0
        %1320 = vmatpush2.msra.mxu0 0.0
        %1321 = vmatprep.subr.mxu0 0.0
        %1322 = vmatpush2.msra.mxu0 0.0
        %1323 = vmatprep.subr.mxu0 0.0
        %1324 = vmatpush2.msra.mxu0 0.0
        %1325 = vmatprep.subr.mxu0 0.0
        %1326 = vmatpush2.msra.mxu0 0.0
        %1327 = vmatprep.mubr.f32.mxu0 0.0
        %1328 = vmatmul.mubr.f32.gmra.mxu0 %v1261
        %v1329 = vpop.f32.mrf.mxu0
        %v1330 = vadd.f32 %v1258, %v1329
        %v1331 = vpop.f32.mrf.mxu0
        %1332 = vdwg.mxu0
        %1333 = vst [vmem:[%s399] sm:$0xf] %v1330
        %s1334 = sand.u32 %s279, 1
        %s1335 = scalar_lea.sflag [#allocation3], %s1334
        %s1336 = sand.u32 %s279, 1
        %s1337 = smul.addr %s1336, 4
        %s1338 = scalar_lea.vmem [#allocation2], %s1337
        // Predicated region
        $region65: #{tpu_custom_call.1} parent=63 // pred_check
          %p1339 = pneg %p289
        $region66: #{tpu_custom_call.1} parent=63 // pred_check_branch
          %1341 = sbr.rel (%p1339) target = $region68
        $region67: #{tpu_custom_call.1} parent=63 // pred_region
          %s1343 = ssub.s32 64, 64
          %1344 = vsyncadd %s1335, %s1343
          %s1345 = smul.addr %s25, 64
          %s1346 = scalar_lea.hbm %s11, %s1345
          %s1348 = sshll.u32 %s1338, 4
          %s1349 = int_to_ptr.vmem [resolvable:$true] %s1348
          %1351 = dma.vmem_to_hbm [thread:$0]  %s1349, 64, %s1346, %s1335
        $region68: #{tpu_custom_call.1} parent=63 // pred_fallthru
          _
      $region64: #{tpu_custom_call.1} parent=5 // pred_fallthru
        _
      %p1352 = scmp.le.s32.totalorder 2, %s20
      // Predicated region
      $region69: #{tpu_custom_call.1} parent=5 // pred_check
        %p1353 = pneg %p1352
      $region70: #{tpu_custom_call.1} parent=5 // pred_check_branch
        %1355 = sbr.rel (%p1353) target = $region72
      $region71: #{tpu_custom_call.1} parent=5 // pred_region
        %s1356 = ssub.s32 %s20, 2
        // Predicated region
        $region73: #{tpu_custom_call.1} parent=71 // pred_check
          %p1357 = pneg %p295
        $region74: #{tpu_custom_call.1} parent=71 // pred_check_branch
          %1359 = sbr.rel (%p1357) target = $region76
        $region75: #{tpu_custom_call.1} parent=71 // pred_region
          %s1360 = sand.u32 %s280, 1
          %s1361 = scalar_lea.sflag [#allocation3], %s1360
          %s1362 = sand.u32 %s280, 1
          %s1363 = smul.addr %s1362, 4
          %s1364 = scalar_lea.vmem [#allocation2], %s1363
          %1365 = dma.done %s1361, 64
        $region76: #{tpu_custom_call.1} parent=71 // pred_fallthru
          _
      $region72: #{tpu_custom_call.1} parent=5 // pred_fallthru
        _
    $region6: #{tpu_custom_call.1} parent=1 // loop_footer
      %s24 = sadd.s32 1, %s20
    $region7: #{tpu_custom_call.1} parent=1 // loop_footer_branch
      %19 = sbr.rel target = $region3
    $region8: #{tpu_custom_call.1} parent=1 // loop_exit
      _
    %1366 = vsyncpa [#allocation3], 1
    %s1367 = scalar_lea.sflag [#allocation3], 1
    %1368 = vsyncpa %s1367, 1

</llo_original>
